<compile_context>
chip_gen: v7x
topology: tpu7x:2x2x1
jax: 0.10.0
libtpu: 0.0.40
codegen_flags: <defaults>
</compile_context>

<pallas_src>
import jax
import jax.numpy as jnp
from jax import lax
from jax.experimental import pallas as pl
from jax.experimental.pallas import tpu as pltpu


def _round_up(x, m):
    return ((x + m - 1) // m) * m


def _pick_batch_tile(B, Sq, target_rows=512):
    """Largest divisor of B with bt*Sq <= target_rows (falls back to 1)."""
    max_bt = max(1, target_rows // max(Sq, 1))
    bt = 1
    for cand in range(1, B + 1):
        if B % cand == 0 and cand <= max_bt:
            bt = cand
    return bt


def _cross_attn_kernel(q_ref, k_ref, v_ref,
                       wq_ref, bq_ref,
                       wk_ref, bk_ref,
                       wv_ref, bv_ref,
                       wo_ref, bo_ref,
                       o_ref):
    bt, sq, dp = q_ref.shape
    sk = k_ref.shape[1]

    # ---- Input projections: one big (Bt*S, Dp) x (Dp, Dp) matmul each. ----
    q2 = q_ref[...].reshape(bt * sq, dp)          # bf16
    k2 = k_ref[...].reshape(bt * sk, dp)
    v2 = v_ref[...].reshape(bt * sk, dp)

    # Weights arrive pre-transposed to (in, out); 1/sqrt(D) already folded
    # into wq / bq by the wrapper.  Accumulate in f32, add f32 bias, then cast.
    Q = jnp.dot(q2, wq_ref[...], preferred_element_type=jnp.float32) + bq_ref[...]
    K = jnp.dot(k2, wk_ref[...], preferred_element_type=jnp.float32) + bk_ref[...]
    V = jnp.dot(v2, wv_ref[...], preferred_element_type=jnp.float32) + bv_ref[...]

    Qb = Q.reshape(bt, sq, dp).astype(jnp.bfloat16)
    Kb = K.reshape(bt, sk, dp).astype(jnp.bfloat16)
    Vb = V.reshape(bt, sk, dp).astype(jnp.bfloat16)

    # ---- Scores: batched Q @ K^T (contract last dims, no explicit .T). ----
    scores = lax.dot_general(
        Qb, Kb, (((2,), (2,)), ((0,), (0,))),
        preferred_element_type=jnp.float32)        # (Bt, Sq, Sk) f32

    # ---- Numerically stable softmax (statistics in f32). ----
    m = jnp.max(scores, axis=-1, keepdims=True)
    e = jnp.exp(scores - m)                        # EUP exp
    denom = jnp.sum(e, axis=-1, keepdims=True)
    attn = e * pl.reciprocal(denom, approx=True)   # EUP reciprocal, VALU stays free

    # ---- attn @ V ----
    ctx = lax.dot_general(
        attn.astype(jnp.bfloat16), Vb, (((2,), (1,)), ((0,), (0,))),
        preferred_element_type=jnp.float32)        # (Bt, Sq, Dp)

    # ---- Output projection ----
    y = jnp.dot(ctx.reshape(bt * sq, dp).astype(jnp.bfloat16), wo_ref[...],
                preferred_element_type=jnp.float32) + bo_ref[...]
    o_ref[...] = y.reshape(bt, sq, dp).astype(o_ref.dtype)


def cross_attention(query, key, value, params, *, batch_tile=None):
    """query: (B, Sq, D); key/value: (B, Sk, D); params: PyTorch-convention weights."""
    B, Sq, D = query.shape
    Sk = key.shape[1]
    Dp = _round_up(D, 128)                         # lane-dense feature dim
    bt = batch_tile if batch_tile is not None else _pick_batch_tile(B, Sq)
    assert B % bt == 0

    scale = 1.0 / float(jnp.sqrt(jnp.float32(D)))  # K.size(-1) of the module

    def prep_w(w, s=1.0):
        # (out, in) torch layout -> (in, out); zero-pad to (Dp, Dp); bf16.
        wt = (w.astype(jnp.float32).T) * s
        wt = jnp.pad(wt, ((0, Dp - D), (0, Dp - D)))
        return wt.astype(jnp.bfloat16)

    def prep_b(b, s=1.0):
        return jnp.pad(b.astype(jnp.float32) * s, (0, Dp - D)).reshape(1, Dp)

    wq = prep_w(params["wq"], scale); bq = prep_b(params["bq"], scale)
    wk = prep_w(params["wk"]);        bk = prep_b(params["bk"])
    wv = prep_w(params["wv"]);        bv = prep_b(params["bv"])
    wo = prep_w(params["wo"]);        bo = prep_b(params["bo"])

    def prep_x(x):
        return jnp.pad(x, ((0, 0), (0, 0), (0, Dp - D))).astype(jnp.bfloat16)

    qp, kp, vp = prep_x(query), prep_x(key), prep_x(value)

    seq_spec = lambda S: pl.BlockSpec((bt, S, Dp), lambda i: (i, 0, 0))
    w_spec = pl.BlockSpec((Dp, Dp), lambda i: (0, 0))
    b_spec = pl.BlockSpec((1, Dp), lambda i: (0, 0))

    # Advisory cost hint for XLA scheduling around the custom call.
    flops_per_b = 2 * (3 * Sq * Dp * Dp + Sq * Sk * Dp * 2 + Sq * Dp * Dp)
    cost = pl.CostEstimate(
        flops=B * flops_per_b,
        transcendentals=B * Sq * Sk,
        bytes_accessed=(qp.size + kp.size + vp.size) * 2 + 4 * Dp * Dp * 2
                       + B * Sq * Dp * 4,
    )

    out = pl.pallas_call(
        _cross_attn_kernel,
        out_shape=jax.ShapeDtypeStruct((B, Sq, Dp), query.dtype),
        grid_spec=pltpu.PrefetchScalarGridSpec(
            num_scalar_prefetch=0,
            grid=(B // bt,),
            in_specs=[
                seq_spec(Sq), seq_spec(Sk), seq_spec(Sk),
                w_spec, b_spec,   # query proj (scale folded in)
                w_spec, b_spec,   # key proj
                w_spec, b_spec,   # value proj
                w_spec, b_spec,   # fc_out
            ],
            out_specs=seq_spec(Sq),
        ),
        compiler_params=pltpu.CompilerParams(
            dimension_semantics=("parallel",),
            vmem_limit_bytes=64 * 1024 * 1024,
        ),
        cost_estimate=cost,
    )(qp, kp, vp, wq, bq, wk, bk, wv, bv, wo, bo)

    # Drop the zero padding on the feature dim.
    return out[:, :, :D]
    # TODO(synk): for very long Sk, switch to a flash-style tiled KV grid axis
    # with online-softmax accumulators to bound VMEM (not needed at these sizes).


def _reference(query, key, value, params):
    D = query.shape[-1]
    Q = query @ params["wq"].T + params["bq"]
    K = key @ params["wk"].T + params["bk"]
    V = value @ params["wv"].T + params["bv"]
    scores = jnp.einsum("bqd,bkd->bqk", Q, K) / jnp.sqrt(jnp.float32(D))
    attn = jax.nn.softmax(scores, axis=-1)
    out = jnp.einsum("bqk,bkd->bqd", attn, V)
    return out @ params["wo"].T + params["bo"]


if __name__ == "__main__":
    B, Sq, Sk, D = 2, 8, 8, 32

    key0 = jax.random.PRNGKey(0)
    keys = jax.random.split(key0, 12)

    bound = 1.0 / jnp.sqrt(jnp.float32(D))  # PyTorch nn.Linear default init range
    def uni(k, shape):
        return jax.random.uniform(k, shape, jnp.float32, -bound, bound)

    params = {
        "wq": uni(keys[0], (D, D)), "bq": uni(keys[1], (D,)),
        "wk": uni(keys[2], (D, D)), "bk": uni(keys[3], (D,)),
        "wv": uni(keys[4], (D, D)), "bv": uni(keys[5], (D,)),
        "wo": uni(keys[6], (D, D)), "bo": uni(keys[7], (D,)),
    }

    query = jax.random.normal(keys[8], (B, Sq, D), jnp.float32)
    key_in = jax.random.normal(keys[9], (B, Sk, D), jnp.float32)
    value = jax.random.normal(keys[10], (B, Sk, D), jnp.float32)

    out = cross_attention(query, key_in, value, params)
    out = jax.block_until_ready(out)

    ref = _reference(query, key_in, value, params)
    assert out.shape == (B, Sq, D)
    # bf16-operand / f32-accumulate MXU path -> compare vs f32 reference with a
    # correspondingly loose tolerance.
    assert jnp.allclose(out, ref, atol=3e-2, rtol=3e-2), "mismatch vs reference"

    print("KERNEL_OK")
</pallas_src>

<mosaic_0001>
module attributes {stable_mosaic.version = 11 : i64} {
  func.func @_cross_attn_kernel(%arg0: i32, %arg1: memref<2x8x128xbf16, #tpu.memory_space<vmem>>, %arg2: memref<2x8x128xbf16, #tpu.memory_space<vmem>>, %arg3: memref<2x8x128xbf16, #tpu.memory_space<vmem>>, %arg4: memref<128x128xbf16, #tpu.memory_space<vmem>>, %arg5: memref<1x128xf32, #tpu.memory_space<vmem>>, %arg6: memref<128x128xbf16, #tpu.memory_space<vmem>>, %arg7: memref<1x128xf32, #tpu.memory_space<vmem>>, %arg8: memref<128x128xbf16, #tpu.memory_space<vmem>>, %arg9: memref<1x128xf32, #tpu.memory_space<vmem>>, %arg10: memref<128x128xbf16, #tpu.memory_space<vmem>>, %arg11: memref<1x128xf32, #tpu.memory_space<vmem>>, %arg12: memref<2x8x128xf32, #tpu.memory_space<vmem>>) attributes {dimension_semantics = [#tpu.dimension_semantics<parallel>], iteration_bounds = array<i64: 1>, scalar_prefetch = 0 : i64, scratch_operands = 0 : i64, tpu.core_type = #tpu.core_type<tc>, window_params = [{transform_indices = @transform_0, window_bounds = array<i64: 2, 8, 128>}, {transform_indices = @transform_1, window_bounds = array<i64: 2, 8, 128>}, {transform_indices = @transform_2, window_bounds = array<i64: 2, 8, 128>}, {pipeline_mode = #tpu.pipeline_mode<synchronous>, transform_indices = @transform_3, window_bounds = array<i64: 128, 128>}, {pipeline_mode = #tpu.pipeline_mode<synchronous>, transform_indices = @transform_4, window_bounds = array<i64: 1, 128>}, {pipeline_mode = #tpu.pipeline_mode<synchronous>, transform_indices = @transform_5, window_bounds = array<i64: 128, 128>}, {pipeline_mode = #tpu.pipeline_mode<synchronous>, transform_indices = @transform_6, window_bounds = array<i64: 1, 128>}, {pipeline_mode = #tpu.pipeline_mode<synchronous>, transform_indices = @transform_7, window_bounds = array<i64: 128, 128>}, {pipeline_mode = #tpu.pipeline_mode<synchronous>, transform_indices = @transform_8, window_bounds = array<i64: 1, 128>}, {pipeline_mode = #tpu.pipeline_mode<synchronous>, transform_indices = @transform_9, window_bounds = array<i64: 128, 128>}, {pipeline_mode = #tpu.pipeline_mode<synchronous>, transform_indices = @transform_10, window_bounds = array<i64: 1, 128>}, {transform_indices = @transform_11, window_bounds = array<i64: 2, 8, 128>}]} {
    %c0 = arith.constant 0 : index
    %c0_0 = arith.constant 0 : index
    %c0_1 = arith.constant 0 : index
    %0 = vector.load %arg1[%c0, %c0_0, %c0_1] : memref<2x8x128xbf16, #tpu.memory_space<vmem>>, vector<2x8x128xbf16>
    %1 = vector.shape_cast %0 : vector<2x8x128xbf16> to vector<16x128xbf16>
    %c0_2 = arith.constant 0 : index
    %c0_3 = arith.constant 0 : index
    %c0_4 = arith.constant 0 : index
    %2 = vector.load %arg2[%c0_2, %c0_3, %c0_4] : memref<2x8x128xbf16, #tpu.memory_space<vmem>>, vector<2x8x128xbf16>
    %3 = vector.shape_cast %2 : vector<2x8x128xbf16> to vector<16x128xbf16>
    %c0_5 = arith.constant 0 : index
    %c0_6 = arith.constant 0 : index
    %c0_7 = arith.constant 0 : index
    %4 = vector.load %arg3[%c0_5, %c0_6, %c0_7] : memref<2x8x128xbf16, #tpu.memory_space<vmem>>, vector<2x8x128xbf16>
    %5 = vector.shape_cast %4 : vector<2x8x128xbf16> to vector<16x128xbf16>
    %c0_8 = arith.constant 0 : index
    %c0_9 = arith.constant 0 : index
    %6 = vector.load %arg4[%c0_8, %c0_9] : memref<128x128xbf16, #tpu.memory_space<vmem>>, vector<128x128xbf16>
    %cst = arith.constant dense<0.000000e+00> : vector<16x128xf32>
    %7 = tpu.matmul %1, %6, %cst {dimension_numbers = #tpu.dot_dimension_numbers<[1], [0], [0], [1], [0, 0, 1, 1], [], []>} : vector<16x128xbf16>, vector<128x128xbf16>, vector<16x128xf32> -> vector<16x128xf32>
    %c0_10 = arith.constant 0 : index
    %c0_11 = arith.constant 0 : index
    %8 = vector.load %arg5[%c0_10, %c0_11] : memref<1x128xf32, #tpu.memory_space<vmem>>, vector<1x128xf32>
    %9 = vector.broadcast %8 : vector<1x128xf32> to vector<16x128xf32>
    %10 = arith.addf %7, %9 : vector<16x128xf32>
    %c0_12 = arith.constant 0 : index
    %c0_13 = arith.constant 0 : index
    %11 = vector.load %arg6[%c0_12, %c0_13] : memref<128x128xbf16, #tpu.memory_space<vmem>>, vector<128x128xbf16>
    %cst_14 = arith.constant dense<0.000000e+00> : vector<16x128xf32>
    %12 = tpu.matmul %3, %11, %cst_14 {dimension_numbers = #tpu.dot_dimension_numbers<[1], [0], [0], [1], [0, 0, 1, 1], [], []>} : vector<16x128xbf16>, vector<128x128xbf16>, vector<16x128xf32> -> vector<16x128xf32>
    %c0_15 = arith.constant 0 : index
    %c0_16 = arith.constant 0 : index
    %13 = vector.load %arg7[%c0_15, %c0_16] : memref<1x128xf32, #tpu.memory_space<vmem>>, vector<1x128xf32>
    %14 = vector.broadcast %13 : vector<1x128xf32> to vector<16x128xf32>
    %15 = arith.addf %12, %14 : vector<16x128xf32>
    %c0_17 = arith.constant 0 : index
    %c0_18 = arith.constant 0 : index
    %16 = vector.load %arg8[%c0_17, %c0_18] : memref<128x128xbf16, #tpu.memory_space<vmem>>, vector<128x128xbf16>
    %cst_19 = arith.constant dense<0.000000e+00> : vector<16x128xf32>
    %17 = tpu.matmul %5, %16, %cst_19 {dimension_numbers = #tpu.dot_dimension_numbers<[1], [0], [0], [1], [0, 0, 1, 1], [], []>} : vector<16x128xbf16>, vector<128x128xbf16>, vector<16x128xf32> -> vector<16x128xf32>
    %c0_20 = arith.constant 0 : index
    %c0_21 = arith.constant 0 : index
    %18 = vector.load %arg9[%c0_20, %c0_21] : memref<1x128xf32, #tpu.memory_space<vmem>>, vector<1x128xf32>
    %19 = vector.broadcast %18 : vector<1x128xf32> to vector<16x128xf32>
    %20 = arith.addf %17, %19 : vector<16x128xf32>
    %21 = vector.shape_cast %10 : vector<16x128xf32> to vector<2x8x128xf32>
    %22 = arith.truncf %21 : vector<2x8x128xf32> to vector<2x8x128xbf16>
    %23 = vector.shape_cast %15 : vector<16x128xf32> to vector<2x8x128xf32>
    %24 = arith.truncf %23 : vector<2x8x128xf32> to vector<2x8x128xbf16>
    %25 = vector.shape_cast %20 : vector<16x128xf32> to vector<2x8x128xf32>
    %26 = arith.truncf %25 : vector<2x8x128xf32> to vector<2x8x128xbf16>
    %cst_22 = arith.constant dense<0.000000e+00> : vector<2x8x8xf32>
    %27 = tpu.matmul %22, %24, %cst_22 {dimension_numbers = #tpu.dot_dimension_numbers<[2], [2], [1], [1], [0, 0, 0, 1, 1, 1], [0], [0]>} : vector<2x8x128xbf16>, vector<2x8x128xbf16>, vector<2x8x8xf32> -> vector<2x8x8xf32>
    %cst_23 = arith.constant dense<0xFF800000> : vector<2x8xf32>
    %28 = vector.multi_reduction <maximumf>, %27, %cst_23 [2] : vector<2x8x8xf32> to vector<2x8xf32>
    %29 = vector.shape_cast %28 : vector<2x8xf32> to vector<2x8x1xf32>
    %30 = vector.broadcast %29 : vector<2x8x1xf32> to vector<2x8x8xf32>
    %31 = arith.subf %27, %30 : vector<2x8x8xf32>
    %32 = math.exp %31 : vector<2x8x8xf32>
    %cst_24 = arith.constant dense<0.000000e+00> : vector<2x8xf32>
    %33 = vector.multi_reduction <add>, %32, %cst_24 [2] : vector<2x8x8xf32> to vector<2x8xf32>
    %34 = vector.shape_cast %33 : vector<2x8xf32> to vector<2x8x1xf32>
    %35 = tpu.reciprocal %34 {approx = true} : vector<2x8x1xf32> -> vector<2x8x1xf32>
    %36 = vector.broadcast %35 : vector<2x8x1xf32> to vector<2x8x8xf32>
    %37 = arith.mulf %32, %36 : vector<2x8x8xf32>
    %38 = arith.truncf %37 : vector<2x8x8xf32> to vector<2x8x8xbf16>
    %cst_25 = arith.constant dense<0.000000e+00> : vector<2x8x128xf32>
    %39 = tpu.matmul %38, %26, %cst_25 {dimension_numbers = #tpu.dot_dimension_numbers<[2], [1], [1], [2], [0, 0, 0, 1, 1, 2], [0], [0]>} : vector<2x8x8xbf16>, vector<2x8x128xbf16>, vector<2x8x128xf32> -> vector<2x8x128xf32>
    %40 = vector.shape_cast %39 : vector<2x8x128xf32> to vector<16x128xf32>
    %41 = arith.truncf %40 : vector<16x128xf32> to vector<16x128xbf16>
    %c0_26 = arith.constant 0 : index
    %c0_27 = arith.constant 0 : index
    %42 = vector.load %arg10[%c0_26, %c0_27] : memref<128x128xbf16, #tpu.memory_space<vmem>>, vector<128x128xbf16>
    %cst_28 = arith.constant dense<0.000000e+00> : vector<16x128xf32>
    %43 = tpu.matmul %41, %42, %cst_28 {dimension_numbers = #tpu.dot_dimension_numbers<[1], [0], [0], [1], [0, 0, 1, 1], [], []>} : vector<16x128xbf16>, vector<128x128xbf16>, vector<16x128xf32> -> vector<16x128xf32>
    %c0_29 = arith.constant 0 : index
    %c0_30 = arith.constant 0 : index
    %44 = vector.load %arg11[%c0_29, %c0_30] : memref<1x128xf32, #tpu.memory_space<vmem>>, vector<1x128xf32>
    %45 = vector.broadcast %44 : vector<1x128xf32> to vector<16x128xf32>
    %46 = arith.addf %43, %45 : vector<16x128xf32>
    %47 = vector.shape_cast %46 : vector<16x128xf32> to vector<2x8x128xf32>
    %c0_31 = arith.constant 0 : index
    %c0_32 = arith.constant 0 : index
    %c0_33 = arith.constant 0 : index
    %48 = vector.load %arg12[%c0_31, %c0_32, %c0_33] : memref<2x8x128xf32, #tpu.memory_space<vmem>>, vector<2x8x128xf32>
    tpu.vector_store %arg12[%c0_31, %c0_32, %c0_33], %47 {strides = array<i32>} : memref<2x8x128xf32, #tpu.memory_space<vmem>>, vector<2x8x128xf32>,
    return
  }
  func.func @transform_0(%arg0: i32) -> (i32, i32, i32) {
    %c0_i32 = arith.constant 0 : i32
    %c0_i32_0 = arith.constant 0 : i32
    %c0_i32_1 = arith.constant 0 : i32
    return %arg0, %c0_i32, %c0_i32_0 : i32, i32, i32
  }
  func.func @transform_1(%arg0: i32) -> (i32, i32, i32) {
    %c0_i32 = arith.constant 0 : i32
    %c0_i32_0 = arith.constant 0 : i32
    %c0_i32_1 = arith.constant 0 : i32
    return %arg0, %c0_i32, %c0_i32_0 : i32, i32, i32
  }
  func.func @transform_2(%arg0: i32) -> (i32, i32, i32) {
    %c0_i32 = arith.constant 0 : i32
    %c0_i32_0 = arith.constant 0 : i32
    %c0_i32_1 = arith.constant 0 : i32
    return %arg0, %c0_i32, %c0_i32_0 : i32, i32, i32
  }
  func.func @transform_3(%arg0: i32) -> (i32, i32) {
    %c0_i32 = arith.constant 0 : i32
    %c0_i32_0 = arith.constant 0 : i32
    %c0_i32_1 = arith.constant 0 : i32
    return %c0_i32, %c0_i32_0 : i32, i32
  }
  func.func @transform_4(%arg0: i32) -> (i32, i32) {
    %c0_i32 = arith.constant 0 : i32
    %c0_i32_0 = arith.constant 0 : i32
    %c0_i32_1 = arith.constant 0 : i32
    return %c0_i32, %c0_i32_0 : i32, i32
  }
  func.func @transform_5(%arg0: i32) -> (i32, i32) {
    %c0_i32 = arith.constant 0 : i32
    %c0_i32_0 = arith.constant 0 : i32
    %c0_i32_1 = arith.constant 0 : i32
    return %c0_i32, %c0_i32_0 : i32, i32
  }
  func.func @transform_6(%arg0: i32) -> (i32, i32) {
    %c0_i32 = arith.constant 0 : i32
    %c0_i32_0 = arith.constant 0 : i32
    %c0_i32_1 = arith.constant 0 : i32
    return %c0_i32, %c0_i32_0 : i32, i32
  }
  func.func @transform_7(%arg0: i32) -> (i32, i32) {
    %c0_i32 = arith.constant 0 : i32
    %c0_i32_0 = arith.constant 0 : i32
    %c0_i32_1 = arith.constant 0 : i32
    return %c0_i32, %c0_i32_0 : i32, i32
  }
  func.func @transform_8(%arg0: i32) -> (i32, i32) {
    %c0_i32 = arith.constant 0 : i32
    %c0_i32_0 = arith.constant 0 : i32
    %c0_i32_1 = arith.constant 0 : i32
    return %c0_i32, %c0_i32_0 : i32, i32
  }
  func.func @transform_9(%arg0: i32) -> (i32, i32) {
    %c0_i32 = arith.constant 0 : i32
    %c0_i32_0 = arith.constant 0 : i32
    %c0_i32_1 = arith.constant 0 : i32
    return %c0_i32, %c0_i32_0 : i32, i32
  }
  func.func @transform_10(%arg0: i32) -> (i32, i32) {
    %c0_i32 = arith.constant 0 : i32
    %c0_i32_0 = arith.constant 0 : i32
    %c0_i32_1 = arith.constant 0 : i32
    return %c0_i32, %c0_i32_0 : i32, i32
  }
  func.func @transform_11(%arg0: i32) -> (i32, i32, i32) {
    %c0_i32 = arith.constant 0 : i32
    %c0_i32_0 = arith.constant 0 : i32
    %c0_i32_1 = arith.constant 0 : i32
    return %arg0, %c0_i32, %c0_i32_0 : i32, i32, i32
  }
}

</mosaic_0001>

<llo_original>
// kernel: tpu_custom_call.1
$region0: #{tpu_custom_call.1}
  #allocation0 [shape = 'u32[]', space=smem, size = 0x4, offset = 0x4, fixed_abs, tag = 'smem constant byte address 0x4 - core index']
  #allocation1 [shape = 'u32[144,128]{1,0:T(1,128)}', space=vmem, size = 0x12000, scoped, tag = 'internal scratch']
  %s0 = inlined_call_operand.hbm [shape: bf16[2,8,128], index: 0, kind: input, shape index: {}]
  %s1 = inlined_call_operand.hbm [shape: bf16[2,8,128], index: 1, kind: input, shape index: {}]
  %s2 = inlined_call_operand.hbm [shape: bf16[2,8,128], index: 2, kind: input, shape index: {}]
  %s3 = inlined_call_operand.hbm [shape: bf16[128,128], index: 3, kind: input, shape index: {}]
  %s4 = inlined_call_operand.hbm [shape: f32[1,128], index: 4, kind: input, shape index: {}]
  %s5 = inlined_call_operand.hbm [shape: bf16[128,128], index: 5, kind: input, shape index: {}]
  %s6 = inlined_call_operand.hbm [shape: f32[1,128], index: 6, kind: input, shape index: {}]
  %s7 = inlined_call_operand.hbm [shape: bf16[128,128], index: 7, kind: input, shape index: {}]
  %s8 = inlined_call_operand.hbm [shape: f32[1,128], index: 8, kind: input, shape index: {}]
  %s9 = inlined_call_operand.hbm [shape: bf16[128,128], index: 9, kind: input, shape index: {}]
  %s10 = inlined_call_operand.hbm [shape: f32[1,128], index: 10, kind: input, shape index: {}]
  %s11 = inlined_call_operand.hbm [shape: f32[2,8,128], index: 11, kind: output, shape index: {}]
  %s12 = sld [smem:[#allocation0]]
  $region98: #{tpu_custom_call.1} parent=0
    _
  %s14 = ssub.s32 1, %s12
  %s15 = scalar_select 0, %s14, %s12
  $region1: #{tpu_custom_call.1} parent=0
    #allocation2 [shape = 'u8[4096]{0}', space=vmem, size = 0x1000, scoped, tag = 'input window, operand 0, single buffered']
    #allocation3 [shape = 's32[1]{0}', space=sflag, size = 0x4, scoped, tag = 'scoped memory for tpu_custom_call.1']
    #allocation4 [shape = 's32[1]{0}', space=sflag, size = 0x4, scoped, tag = 'scoped memory for tpu_custom_call.1']
    #allocation5 [shape = 'u8[4096]{0}', space=vmem, size = 0x1000, scoped, tag = 'input window, operand 1, single buffered']
    #allocation6 [shape = 's32[1]{0}', space=sflag, size = 0x4, scoped, tag = 'scoped memory for tpu_custom_call.1']
    #allocation7 [shape = 'u8[4096]{0}', space=vmem, size = 0x1000, scoped, tag = 'input window, operand 2, single buffered']
    #allocation8 [shape = 'u8[32768]{0}', space=vmem, size = 0x8000, scoped, tag = 'input window, operand 3, single buffered']
    #allocation9 [shape = 's32[1]{0}', space=sflag, size = 0x4, scoped, tag = 'scoped memory for tpu_custom_call.1']
    #allocation10 [shape = 'u8[512]{0}', space=vmem, size = 0x400, scoped, tag = 'input window, operand 4, single buffered']
    #allocation11 [shape = 'u8[32768]{0}', space=vmem, size = 0x8000, scoped, tag = 'input window, operand 5, single buffered']
    #allocation12 [shape = 's32[1]{0}', space=sflag, size = 0x4, scoped, tag = 'scoped memory for tpu_custom_call.1']
    #allocation13 [shape = 'u8[512]{0}', space=vmem, size = 0x400, scoped, tag = 'input window, operand 6, single buffered']
    #allocation14 [shape = 'u8[32768]{0}', space=vmem, size = 0x8000, scoped, tag = 'input window, operand 7, single buffered']
    #allocation15 [shape = 's32[1]{0}', space=sflag, size = 0x4, scoped, tag = 'scoped memory for tpu_custom_call.1']
    #allocation16 [shape = 'u8[512]{0}', space=vmem, size = 0x400, scoped, tag = 'input window, operand 8, single buffered']
    #allocation17 [shape = 'u8[32768]{0}', space=vmem, size = 0x8000, scoped, tag = 'input window, operand 9, single buffered']
    #allocation18 [shape = 's32[1]{0}', space=sflag, size = 0x4, scoped, tag = 'scoped memory for tpu_custom_call.1']
    #allocation19 [shape = 'u8[512]{0}', space=vmem, size = 0x400, scoped, tag = 'input window, operand 10, single buffered']
    #allocation20 [shape = 'u8[8192]{0}', space=vmem, size = 0x2000, scoped, tag = 'output window, operand 0, single buffered']
    %16 = vsyncpa [#allocation3], 0
    %17 = vsyncpa [#allocation6], 0
    %18 = vsyncpa [#allocation9], 0
    %19 = vsyncpa [#allocation12], 0
    %20 = vsyncpa [#allocation15], 0
    %21 = vsyncpa [#allocation18], 0
    %22 = vsyncpa [#allocation4], 0
    // Predicated region
    $region2: #{tpu_custom_call.1} parent=1 // pred_check
      _
    $region3: #{tpu_custom_call.1} parent=1 // pred_check_branch
      %24 = sbr.rel (0) target = $region5
    $region4: #{tpu_custom_call.1} parent=1 // pred_region
      %s26 = ssub.s32 128, 128
      %27 = vsyncadd [#allocation3], %s26
      %s28 = sshll.u32 [#allocation2], 4
      %s29 = int_to_ptr.vmem [resolvable:$true] %s28
      %34 = dma.hbm_to_vmem [thread:$0]  %s0, 128, %s29, [#allocation3], 64, 64, 4
    $region5: #{tpu_custom_call.1} parent=1 // pred_fallthru
      _
    // Predicated region
    $region6: #{tpu_custom_call.1} parent=1 // pred_check
      _
    $region7: #{tpu_custom_call.1} parent=1 // pred_check_branch
      %36 = sbr.rel (0) target = $region9
    $region8: #{tpu_custom_call.1} parent=1 // pred_region
      %s38 = ssub.s32 128, 128
      %39 = vsyncadd [#allocation6], %s38
      %s40 = sshll.u32 [#allocation5], 4
      %s41 = int_to_ptr.vmem [resolvable:$true] %s40
      %46 = dma.hbm_to_vmem [thread:$0]  %s1, 128, %s41, [#allocation6], 64, 64, 4
    $region9: #{tpu_custom_call.1} parent=1 // pred_fallthru
      _
    // Predicated region
    $region10: #{tpu_custom_call.1} parent=1 // pred_check
      _
    $region11: #{tpu_custom_call.1} parent=1 // pred_check_branch
      %48 = sbr.rel (0) target = $region13
    $region12: #{tpu_custom_call.1} parent=1 // pred_region
      %s50 = ssub.s32 128, 128
      %51 = vsyncadd [#allocation6], %s50
      %s52 = sshll.u32 [#allocation7], 4
      %s53 = int_to_ptr.vmem [resolvable:$true] %s52
      %58 = dma.hbm_to_vmem [thread:$0]  %s2, 128, %s53, [#allocation6], 64, 64, 4
    $region13: #{tpu_custom_call.1} parent=1 // pred_fallthru
      _
    // Predicated region
    $region14: #{tpu_custom_call.1} parent=1 // pred_check
      _
    $region15: #{tpu_custom_call.1} parent=1 // pred_check_branch
      %60 = sbr.rel (0) target = $region17
    $region16: #{tpu_custom_call.1} parent=1 // pred_region
      %s62 = ssub.s32 1024, 1024
      %63 = vsyncadd [#allocation9], %s62
      %s64 = sshll.u32 [#allocation8], 4
      %s65 = int_to_ptr.vmem [resolvable:$true] %s64
      %70 = dma.hbm_to_vmem [thread:$0]  %s3, 1024, %s65, [#allocation9], 64, 64, 4
    $region17: #{tpu_custom_call.1} parent=1 // pred_fallthru
      _
    // Predicated region
    $region18: #{tpu_custom_call.1} parent=1 // pred_check
      _
    $region19: #{tpu_custom_call.1} parent=1 // pred_check_branch
      %72 = sbr.rel (0) target = $region21
    $region20: #{tpu_custom_call.1} parent=1 // pred_region
      %s74 = ssub.s32 16, 16
      %75 = vsyncadd [#allocation9], %s74
      %s77 = sshll.u32 [#allocation10], 4
      %s78 = int_to_ptr.vmem [resolvable:$true] %s77
      %80 = dma.hbm_to_vmem [thread:$0]  %s4, 16, %s78, [#allocation9]
    $region21: #{tpu_custom_call.1} parent=1 // pred_fallthru
      _
    // Predicated region
    $region22: #{tpu_custom_call.1} parent=1 // pred_check
      _
    $region23: #{tpu_custom_call.1} parent=1 // pred_check_branch
      %82 = sbr.rel (0) target = $region25
    $region24: #{tpu_custom_call.1} parent=1 // pred_region
      %s84 = ssub.s32 1024, 1024
      %85 = vsyncadd [#allocation12], %s84
      %s86 = sshll.u32 [#allocation11], 4
      %s87 = int_to_ptr.vmem [resolvable:$true] %s86
      %92 = dma.hbm_to_vmem [thread:$0]  %s5, 1024, %s87, [#allocation12], 64, 64, 4
    $region25: #{tpu_custom_call.1} parent=1 // pred_fallthru
      _
    // Predicated region
    $region26: #{tpu_custom_call.1} parent=1 // pred_check
      _
    $region27: #{tpu_custom_call.1} parent=1 // pred_check_branch
      %94 = sbr.rel (0) target = $region29
    $region28: #{tpu_custom_call.1} parent=1 // pred_region
      %s96 = ssub.s32 16, 16
      %97 = vsyncadd [#allocation12], %s96
      %s99 = sshll.u32 [#allocation13], 4
      %s100 = int_to_ptr.vmem [resolvable:$true] %s99
      %102 = dma.hbm_to_vmem [thread:$0]  %s6, 16, %s100, [#allocation12]
    $region29: #{tpu_custom_call.1} parent=1 // pred_fallthru
      _
    // Predicated region
    $region30: #{tpu_custom_call.1} parent=1 // pred_check
      _
    $region31: #{tpu_custom_call.1} parent=1 // pred_check_branch
      %104 = sbr.rel (0) target = $region33
    $region32: #{tpu_custom_call.1} parent=1 // pred_region
      %s106 = ssub.s32 1024, 1024
      %107 = vsyncadd [#allocation15], %s106
      %s108 = sshll.u32 [#allocation14], 4
      %s109 = int_to_ptr.vmem [resolvable:$true] %s108
      %114 = dma.hbm_to_vmem [thread:$0]  %s7, 1024, %s109, [#allocation15], 64, 64, 4
    $region33: #{tpu_custom_call.1} parent=1 // pred_fallthru
      _
    // Predicated region
    $region34: #{tpu_custom_call.1} parent=1 // pred_check
      _
    $region35: #{tpu_custom_call.1} parent=1 // pred_check_branch
      %116 = sbr.rel (0) target = $region37
    $region36: #{tpu_custom_call.1} parent=1 // pred_region
      %s118 = ssub.s32 16, 16
      %119 = vsyncadd [#allocation15], %s118
      %s121 = sshll.u32 [#allocation16], 4
      %s122 = int_to_ptr.vmem [resolvable:$true] %s121
      %124 = dma.hbm_to_vmem [thread:$0]  %s8, 16, %s122, [#allocation15]
    $region37: #{tpu_custom_call.1} parent=1 // pred_fallthru
      _
    // Predicated region
    $region38: #{tpu_custom_call.1} parent=1 // pred_check
      _
    $region39: #{tpu_custom_call.1} parent=1 // pred_check_branch
      %126 = sbr.rel (0) target = $region41
    $region40: #{tpu_custom_call.1} parent=1 // pred_region
      %s128 = ssub.s32 1024, 1024
      %129 = vsyncadd [#allocation18], %s128
      %s130 = sshll.u32 [#allocation17], 4
      %s131 = int_to_ptr.vmem [resolvable:$true] %s130
      %136 = dma.hbm_to_vmem [thread:$0]  %s9, 1024, %s131, [#allocation18], 64, 64, 4
    $region41: #{tpu_custom_call.1} parent=1 // pred_fallthru
      _
    // Predicated region
    $region42: #{tpu_custom_call.1} parent=1 // pred_check
      _
    $region43: #{tpu_custom_call.1} parent=1 // pred_check_branch
      %138 = sbr.rel (0) target = $region45
    $region44: #{tpu_custom_call.1} parent=1 // pred_region
      %s140 = ssub.s32 16, 16
      %141 = vsyncadd [#allocation18], %s140
      %s143 = sshll.u32 [#allocation19], 4
      %s144 = int_to_ptr.vmem [resolvable:$true] %s143
      %146 = dma.hbm_to_vmem [thread:$0]  %s10, 16, %s144, [#allocation18]
    $region45: #{tpu_custom_call.1} parent=1 // pred_fallthru
      _
    // Predicated region
    $region46: #{tpu_custom_call.1} parent=1 // pred_check
      _
    $region47: #{tpu_custom_call.1} parent=1 // pred_check_branch
      %148 = sbr.rel (0) target = $region49
    $region48: #{tpu_custom_call.1} parent=1 // pred_region
      %149 = dma.done [#allocation3], 128
    $region49: #{tpu_custom_call.1} parent=1 // pred_fallthru
      _
    // Predicated region
    $region50: #{tpu_custom_call.1} parent=1 // pred_check
      _
    $region51: #{tpu_custom_call.1} parent=1 // pred_check_branch
      %151 = sbr.rel (0) target = $region53
    $region52: #{tpu_custom_call.1} parent=1 // pred_region
      %152 = dma.done [#allocation6], 128
    $region53: #{tpu_custom_call.1} parent=1 // pred_fallthru
      _
    // Predicated region
    $region54: #{tpu_custom_call.1} parent=1 // pred_check
      _
    $region55: #{tpu_custom_call.1} parent=1 // pred_check_branch
      %154 = sbr.rel (0) target = $region57
    $region56: #{tpu_custom_call.1} parent=1 // pred_region
      %155 = dma.done [#allocation6], 128
    $region57: #{tpu_custom_call.1} parent=1 // pred_fallthru
      _
    // Predicated region
    $region58: #{tpu_custom_call.1} parent=1 // pred_check
      _
    $region59: #{tpu_custom_call.1} parent=1 // pred_check_branch
      %157 = sbr.rel (0) target = $region61
    $region60: #{tpu_custom_call.1} parent=1 // pred_region
      %158 = dma.done [#allocation9], 1024
    $region61: #{tpu_custom_call.1} parent=1 // pred_fallthru
      _
    // Predicated region
    $region62: #{tpu_custom_call.1} parent=1 // pred_check
      _
    $region63: #{tpu_custom_call.1} parent=1 // pred_check_branch
      %160 = sbr.rel (0) target = $region65
    $region64: #{tpu_custom_call.1} parent=1 // pred_region
      %161 = dma.done [#allocation9], 16
    $region65: #{tpu_custom_call.1} parent=1 // pred_fallthru
      _
    // Predicated region
    $region66: #{tpu_custom_call.1} parent=1 // pred_check
      _
    $region67: #{tpu_custom_call.1} parent=1 // pred_check_branch
      %163 = sbr.rel (0) target = $region69
    $region68: #{tpu_custom_call.1} parent=1 // pred_region
      %164 = dma.done [#allocation12], 1024
    $region69: #{tpu_custom_call.1} parent=1 // pred_fallthru
      _
    // Predicated region
    $region70: #{tpu_custom_call.1} parent=1 // pred_check
      _
    $region71: #{tpu_custom_call.1} parent=1 // pred_check_branch
      %166 = sbr.rel (0) target = $region73
    $region72: #{tpu_custom_call.1} parent=1 // pred_region
      %167 = dma.done [#allocation12], 16
    $region73: #{tpu_custom_call.1} parent=1 // pred_fallthru
      _
    // Predicated region
    $region74: #{tpu_custom_call.1} parent=1 // pred_check
      _
    $region75: #{tpu_custom_call.1} parent=1 // pred_check_branch
      %169 = sbr.rel (0) target = $region77
    $region76: #{tpu_custom_call.1} parent=1 // pred_region
      %170 = dma.done [#allocation15], 1024
    $region77: #{tpu_custom_call.1} parent=1 // pred_fallthru
      _
    // Predicated region
    $region78: #{tpu_custom_call.1} parent=1 // pred_check
      _
    $region79: #{tpu_custom_call.1} parent=1 // pred_check_branch
      %172 = sbr.rel (0) target = $region81
    $region80: #{tpu_custom_call.1} parent=1 // pred_region
      %173 = dma.done [#allocation15], 16
    $region81: #{tpu_custom_call.1} parent=1 // pred_fallthru
      _
    // Predicated region
    $region82: #{tpu_custom_call.1} parent=1 // pred_check
      _
    $region83: #{tpu_custom_call.1} parent=1 // pred_check_branch
      %175 = sbr.rel (0) target = $region85
    $region84: #{tpu_custom_call.1} parent=1 // pred_region
      %176 = dma.done [#allocation18], 1024
    $region85: #{tpu_custom_call.1} parent=1 // pred_fallthru
      _
    // Predicated region
    $region86: #{tpu_custom_call.1} parent=1 // pred_check
      _
    $region87: #{tpu_custom_call.1} parent=1 // pred_check_branch
      %178 = sbr.rel (0) target = $region89
    $region88: #{tpu_custom_call.1} parent=1 // pred_region
      %179 = dma.done [#allocation18], 16
    $region89: #{tpu_custom_call.1} parent=1 // pred_fallthru
      _
    %v181 = vld [vmem:[#allocation2] sm:$0xf]
    %v182 = vld [vmem:[#allocation2 + $0x4] sm:$0xf]
    %v183 = vld [vmem:[#allocation5] sm:$0xf]
    %v184 = vld [vmem:[#allocation5 + $0x4] sm:$0xf]
    %v185 = vld [vmem:[#allocation7] sm:$0xf]
    %v186 = vld [vmem:[#allocation7 + $0x4] sm:$0xf]
    %v187 = vld [vmem:[#allocation8] sm:$0xf]
    %v188 = vld [vmem:[#allocation8 + $0x4] sm:$0xf]
    %v189 = vld [vmem:[#allocation8 + $0x8] sm:$0xf]
    %v190 = vld [vmem:[#allocation8 + $0xc] sm:$0xf]
    %v191 = vld [vmem:[#allocation8 + $0x10] sm:$0xf]
    %v192 = vld [vmem:[#allocation8 + $0x14] sm:$0xf]
    %v193 = vld [vmem:[#allocation8 + $0x18] sm:$0xf]
    %v194 = vld [vmem:[#allocation8 + $0x1c] sm:$0xf]
    %v195 = vld [vmem:[#allocation8 + $0x20] sm:$0xf]
    %v196 = vld [vmem:[#allocation8 + $0x24] sm:$0xf]
    %v197 = vld [vmem:[#allocation8 + $0x28] sm:$0xf]
    %v198 = vld [vmem:[#allocation8 + $0x2c] sm:$0xf]
    %v199 = vld [vmem:[#allocation8 + $0x30] sm:$0xf]
    %v200 = vld [vmem:[#allocation8 + $0x34] sm:$0xf]
    %v201 = vld [vmem:[#allocation8 + $0x38] sm:$0xf]
    %v202 = vld [vmem:[#allocation8 + $0x3c] sm:$0xf]
    %v203 = vld [vmem:[#allocation10] sm:$0x1]
    %v205 = vlaneseq
    %v206 = vshrl.u32 %v205, 7
    %v207 = vsub.s32 0, %v206
    %v208 = vrot.slane %v203, %v207
    %v212 = vunpack.c.l.b16 %v181
    %v213 = vunpack.c.l.b16 %v182
    %v214 = vpack.c.b16 %v213, %v212
    %v232 = vunpack.c.l.b16 %v187
    %v233 = vunpack.c.l.b16 %v188
    %v234 = vunpack.c.l.b16 %v189
    %v235 = vunpack.c.l.b16 %v190
    %v236 = vunpack.c.l.b16 %v191
    %v237 = vunpack.c.l.b16 %v192
    %v238 = vunpack.c.l.b16 %v193
    %v239 = vunpack.c.l.b16 %v194
    %v240 = vunpack.c.l.b16 %v195
    %v241 = vunpack.c.l.b16 %v196
    %v242 = vunpack.c.l.b16 %v197
    %v243 = vunpack.c.l.b16 %v198
    %v244 = vunpack.c.l.b16 %v199
    %v245 = vunpack.c.l.b16 %v200
    %v246 = vunpack.c.l.b16 %v201
    %v247 = vunpack.c.l.b16 %v202
    %v248 = vpack.c.b16 %v233, %v232
    %v249 = vpack.c.b16 %v235, %v234
    %v250 = vpack.c.b16 %v237, %v236
    %v251 = vpack.c.b16 %v239, %v238
    %v252 = vpack.c.b16 %v241, %v240
    %v253 = vpack.c.b16 %v243, %v242
    %v254 = vpack.c.b16 %v245, %v244
    %v255 = vpack.c.b16 %v247, %v246
    %264 = vmatprep.subr.bf16.mxu0 0
    %265 = vmatpush1.bf16.msra.mxu0 %v248
    %266 = vmatprep.subr.bf16.mxu0 0
    %267 = vmatpush1.bf16.msra.mxu0 %v249
    %268 = vmatprep.subr.bf16.mxu0 0
    %269 = vmatpush1.bf16.msra.mxu0 %v250
    %270 = vmatprep.subr.bf16.mxu0 0
    %271 = vmatpush1.bf16.msra.mxu0 %v251
    %272 = vmatprep.subr.bf16.mxu0 0
    %273 = vmatpush1.bf16.msra.mxu0 %v252
    %274 = vmatprep.subr.bf16.mxu0 0
    %275 = vmatpush1.bf16.msra.mxu0 %v253
    %276 = vmatprep.subr.bf16.mxu0 0
    %277 = vmatpush1.bf16.msra.mxu0 %v254
    %278 = vmatprep.subr.bf16.mxu0 0
    %279 = vmatpush1.bf16.msra.mxu0 %v255
    %280 = vmatprep.subr.bf16.mxu0 0
    %281 = vmatpush1.bf16.msra.mxu0 0
    %282 = vmatprep.subr.bf16.mxu0 0
    %283 = vmatpush1.bf16.msra.mxu0 0
    %284 = vmatprep.subr.bf16.mxu0 0
    %285 = vmatpush1.bf16.msra.mxu0 0
    %286 = vmatprep.subr.bf16.mxu0 0
    %287 = vmatpush1.bf16.msra.mxu0 0
    %288 = vmatprep.subr.bf16.mxu0 0
    %289 = vmatpush1.bf16.msra.mxu0 0
    %290 = vmatprep.subr.bf16.mxu0 0
    %291 = vmatpush1.bf16.msra.mxu0 0
    %292 = vmatprep.subr.bf16.mxu0 0
    %293 = vmatpush1.bf16.msra.mxu0 0
    %294 = vmatprep.subr.bf16.mxu0 0
    %295 = vmatpush1.bf16.msra.mxu0 0
    %296 = vmatprep.mubr.bf16.mxu0 0
    %297 = vmatmul.mubr.bf16.gmra.mrb[0].mxu0 %v214
    %v298 = vpop.f32.mrb[0].mxu0
    %v299 = vadd.f32 %v208, %v298
    %v300 = vpop.f32.mrb[0].mxu0
    %v301 = vpop.f32.mrb[0].mxu0
    %v302 = vadd.f32 %v208, %v301
    %v303 = vpop.f32.mrb[0].mxu0
    %304 = vdwg.mxu0
    %v305 = vld [vmem:[#allocation11] sm:$0xf]
    %v306 = vld [vmem:[#allocation11 + $0x4] sm:$0xf]
    %v307 = vld [vmem:[#allocation11 + $0x8] sm:$0xf]
    %v308 = vld [vmem:[#allocation11 + $0xc] sm:$0xf]
    %v309 = vld [vmem:[#allocation11 + $0x10] sm:$0xf]
    %v310 = vld [vmem:[#allocation11 + $0x14] sm:$0xf]
    %v311 = vld [vmem:[#allocation11 + $0x18] sm:$0xf]
    %v312 = vld [vmem:[#allocation11 + $0x1c] sm:$0xf]
    %v313 = vld [vmem:[#allocation11 + $0x20] sm:$0xf]
    %v314 = vld [vmem:[#allocation11 + $0x24] sm:$0xf]
    %v315 = vld [vmem:[#allocation11 + $0x28] sm:$0xf]
    %v316 = vld [vmem:[#allocation11 + $0x2c] sm:$0xf]
    %v317 = vld [vmem:[#allocation11 + $0x30] sm:$0xf]
    %v318 = vld [vmem:[#allocation11 + $0x34] sm:$0xf]
    %v319 = vld [vmem:[#allocation11 + $0x38] sm:$0xf]
    %v320 = vld [vmem:[#allocation11 + $0x3c] sm:$0xf]
    %v321 = vld [vmem:[#allocation13] sm:$0x1]
    %v323 = vlaneseq
    %v324 = vshrl.u32 %v323, 7
    %v325 = vsub.s32 0, %v324
    %v326 = vrot.slane %v321, %v325
    %v330 = vunpack.c.l.b16 %v183
    %v331 = vunpack.c.l.b16 %v184
    %v332 = vpack.c.b16 %v331, %v330
    %v350 = vunpack.c.l.b16 %v305
    %v351 = vunpack.c.l.b16 %v306
    %v352 = vunpack.c.l.b16 %v307
    %v353 = vunpack.c.l.b16 %v308
    %v354 = vunpack.c.l.b16 %v309
    %v355 = vunpack.c.l.b16 %v310
    %v356 = vunpack.c.l.b16 %v311
    %v357 = vunpack.c.l.b16 %v312
    %v358 = vunpack.c.l.b16 %v313
    %v359 = vunpack.c.l.b16 %v314
    %v360 = vunpack.c.l.b16 %v315
    %v361 = vunpack.c.l.b16 %v316
    %v362 = vunpack.c.l.b16 %v317
    %v363 = vunpack.c.l.b16 %v318
    %v364 = vunpack.c.l.b16 %v319
    %v365 = vunpack.c.l.b16 %v320
    %v366 = vpack.c.b16 %v351, %v350
    %v367 = vpack.c.b16 %v353, %v352
    %v368 = vpack.c.b16 %v355, %v354
    %v369 = vpack.c.b16 %v357, %v356
    %v370 = vpack.c.b16 %v359, %v358
    %v371 = vpack.c.b16 %v361, %v360
    %v372 = vpack.c.b16 %v363, %v362
    %v373 = vpack.c.b16 %v365, %v364
    %382 = vmatprep.subr.bf16.mxu0 0
    %383 = vmatpush1.bf16.msra.mxu0 %v366
    %384 = vmatprep.subr.bf16.mxu0 0
    %385 = vmatpush1.bf16.msra.mxu0 %v367
    %386 = vmatprep.subr.bf16.mxu0 0
    %387 = vmatpush1.bf16.msra.mxu0 %v368
    %388 = vmatprep.subr.bf16.mxu0 0
    %389 = vmatpush1.bf16.msra.mxu0 %v369
    %390 = vmatprep.subr.bf16.mxu0 0
    %391 = vmatpush1.bf16.msra.mxu0 %v370
    %392 = vmatprep.subr.bf16.mxu0 0
    %393 = vmatpush1.bf16.msra.mxu0 %v371
    %394 = vmatprep.subr.bf16.mxu0 0
    %395 = vmatpush1.bf16.msra.mxu0 %v372
    %396 = vmatprep.subr.bf16.mxu0 0
    %397 = vmatpush1.bf16.msra.mxu0 %v373
    %398 = vmatprep.subr.bf16.mxu0 0
    %399 = vmatpush1.bf16.msra.mxu0 0
    %400 = vmatprep.subr.bf16.mxu0 0
    %401 = vmatpush1.bf16.msra.mxu0 0
    %402 = vmatprep.subr.bf16.mxu0 0
    %403 = vmatpush1.bf16.msra.mxu0 0
    %404 = vmatprep.subr.bf16.mxu0 0
    %405 = vmatpush1.bf16.msra.mxu0 0
    %406 = vmatprep.subr.bf16.mxu0 0
    %407 = vmatpush1.bf16.msra.mxu0 0
    %408 = vmatprep.subr.bf16.mxu0 0
    %409 = vmatpush1.bf16.msra.mxu0 0
    %410 = vmatprep.subr.bf16.mxu0 0
    %411 = vmatpush1.bf16.msra.mxu0 0
    %412 = vmatprep.subr.bf16.mxu0 0
    %413 = vmatpush1.bf16.msra.mxu0 0
    %414 = vmatprep.mubr.bf16.mxu0 0
    %415 = vmatmul.mubr.bf16.gmra.mrb[0].mxu0 %v332
    %v416 = vpop.f32.mrb[0].mxu0
    %v417 = vadd.f32 %v326, %v416
    %v418 = vpop.f32.mrb[0].mxu0
    %v419 = vpop.f32.mrb[0].mxu0
    %v420 = vadd.f32 %v326, %v419
    %v421 = vpop.f32.mrb[0].mxu0
    %422 = vdwg.mxu0
    %v423 = vld [vmem:[#allocation14] sm:$0xf]
    %v424 = vld [vmem:[#allocation14 + $0x4] sm:$0xf]
    %v425 = vld [vmem:[#allocation14 + $0x8] sm:$0xf]
    %v426 = vld [vmem:[#allocation14 + $0xc] sm:$0xf]
    %v427 = vld [vmem:[#allocation14 + $0x10] sm:$0xf]
    %v428 = vld [vmem:[#allocation14 + $0x14] sm:$0xf]
    %v429 = vld [vmem:[#allocation14 + $0x18] sm:$0xf]
    %v430 = vld [vmem:[#allocation14 + $0x1c] sm:$0xf]
    %v431 = vld [vmem:[#allocation14 + $0x20] sm:$0xf]
    %v432 = vld [vmem:[#allocation14 + $0x24] sm:$0xf]
    %v433 = vld [vmem:[#allocation14 + $0x28] sm:$0xf]
    %v434 = vld [vmem:[#allocation14 + $0x2c] sm:$0xf]
    %v435 = vld [vmem:[#allocation14 + $0x30] sm:$0xf]
    %v436 = vld [vmem:[#allocation14 + $0x34] sm:$0xf]
    %v437 = vld [vmem:[#allocation14 + $0x38] sm:$0xf]
    %v438 = vld [vmem:[#allocation14 + $0x3c] sm:$0xf]
    %v439 = vld [vmem:[#allocation16] sm:$0x1]
    %v441 = vlaneseq
    %v442 = vshrl.u32 %v441, 7
    %v443 = vsub.s32 0, %v442
    %v444 = vrot.slane %v439, %v443
    %v448 = vunpack.c.l.b16 %v185
    %v449 = vunpack.c.l.b16 %v186
    %v450 = vpack.c.b16 %v449, %v448
    %v468 = vunpack.c.l.b16 %v423
    %v469 = vunpack.c.l.b16 %v424
    %v470 = vunpack.c.l.b16 %v425
    %v471 = vunpack.c.l.b16 %v426
    %v472 = vunpack.c.l.b16 %v427
    %v473 = vunpack.c.l.b16 %v428
    %v474 = vunpack.c.l.b16 %v429
    %v475 = vunpack.c.l.b16 %v430
    %v476 = vunpack.c.l.b16 %v431
    %v477 = vunpack.c.l.b16 %v432
    %v478 = vunpack.c.l.b16 %v433
    %v479 = vunpack.c.l.b16 %v434
    %v480 = vunpack.c.l.b16 %v435
    %v481 = vunpack.c.l.b16 %v436
    %v482 = vunpack.c.l.b16 %v437
    %v483 = vunpack.c.l.b16 %v438
    %v484 = vpack.c.b16 %v469, %v468
    %v485 = vpack.c.b16 %v471, %v470
    %v486 = vpack.c.b16 %v473, %v472
    %v487 = vpack.c.b16 %v475, %v474
    %v488 = vpack.c.b16 %v477, %v476
    %v489 = vpack.c.b16 %v479, %v478
    %v490 = vpack.c.b16 %v481, %v480
    %v491 = vpack.c.b16 %v483, %v482
    %500 = vmatprep.subr.bf16.mxu0 0
    %501 = vmatpush1.bf16.msra.mxu0 %v484
    %502 = vmatprep.subr.bf16.mxu0 0
    %503 = vmatpush1.bf16.msra.mxu0 %v485
    %504 = vmatprep.subr.bf16.mxu0 0
    %505 = vmatpush1.bf16.msra.mxu0 %v486
    %506 = vmatprep.subr.bf16.mxu0 0
    %507 = vmatpush1.bf16.msra.mxu0 %v487
    %508 = vmatprep.subr.bf16.mxu0 0
    %509 = vmatpush1.bf16.msra.mxu0 %v488
    %510 = vmatprep.subr.bf16.mxu0 0
    %511 = vmatpush1.bf16.msra.mxu0 %v489
    %512 = vmatprep.subr.bf16.mxu0 0
    %513 = vmatpush1.bf16.msra.mxu0 %v490
    %514 = vmatprep.subr.bf16.mxu0 0
    %515 = vmatpush1.bf16.msra.mxu0 %v491
    %516 = vmatprep.subr.bf16.mxu0 0
    %517 = vmatpush1.bf16.msra.mxu0 0
    %518 = vmatprep.subr.bf16.mxu0 0
    %519 = vmatpush1.bf16.msra.mxu0 0
    %520 = vmatprep.subr.bf16.mxu0 0
    %521 = vmatpush1.bf16.msra.mxu0 0
    %522 = vmatprep.subr.bf16.mxu0 0
    %523 = vmatpush1.bf16.msra.mxu0 0
    %524 = vmatprep.subr.bf16.mxu0 0
    %525 = vmatpush1.bf16.msra.mxu0 0
    %526 = vmatprep.subr.bf16.mxu0 0
    %527 = vmatpush1.bf16.msra.mxu0 0
    %528 = vmatprep.subr.bf16.mxu0 0
    %529 = vmatpush1.bf16.msra.mxu0 0
    %530 = vmatprep.subr.bf16.mxu0 0
    %531 = vmatpush1.bf16.msra.mxu0 0
    %532 = vmatprep.mubr.bf16.mxu0 0
    %533 = vmatmul.mubr.bf16.gmra.mrb[0].mxu0 %v450
    %v534 = vpop.f32.mrb[0].mxu0
    %v535 = vadd.f32 %v444, %v534
    %v536 = vpop.f32.mrb[0].mxu0
    %v537 = vpop.f32.mrb[0].mxu0
    %v538 = vadd.f32 %v444, %v537
    %v539 = vpop.f32.mrb[0].mxu0
    %540 = vdwg.mxu0
    %v541 = vpack.c.bf16 %v299, %v299
    %v542 = vpack.c.bf16 %v302, %v302
    %v543 = vpack.c.bf16 %v417, %v417
    %v544 = vpack.c.bf16 %v420, %v420
    %v545 = vpack.c.bf16 %v535, %v535
    %v546 = vpack.c.bf16 %v538, %v538
    %547 = vmatprep.subr.bf16.mxu0 0
    %548 = vmatpush1.bf16.xpose.msra.mxu0 %v543
    %549 = vmatprep.subr.bf16.mxu0 0
    %550 = vmatpush1.bf16.xpose.msra.mxu0 0
    %551 = vmatprep.subr.bf16.mxu0 0
    %552 = vmatpush1.bf16.xpose.msra.mxu0 0
    %553 = vmatprep.subr.bf16.mxu0 0
    %554 = vmatpush1.bf16.xpose.msra.mxu0 0
    %555 = vmatprep.subr.bf16.mxu0 0
    %556 = vmatpush1.bf16.xpose.msra.mxu0 0
    %557 = vmatprep.subr.bf16.mxu0 0
    %558 = vmatpush1.bf16.xpose.msra.mxu0 0
    %559 = vmatprep.subr.bf16.mxu0 0
    %560 = vmatpush1.bf16.xpose.msra.mxu0 0
    %561 = vmatprep.subr.bf16.mxu0 0
    %562 = vmatpush1.bf16.xpose.msra.mxu0 0
    %563 = vmatprep.subr.bf16.mxu0 0
    %564 = vmatpush1.bf16.xpose.msra.mxu0 0
    %565 = vmatprep.subr.bf16.mxu0 0
    %566 = vmatpush1.bf16.xpose.msra.mxu0 0
    %567 = vmatprep.subr.bf16.mxu0 0
    %568 = vmatpush1.bf16.xpose.msra.mxu0 0
    %569 = vmatprep.subr.bf16.mxu0 0
    %570 = vmatpush1.bf16.xpose.msra.mxu0 0
    %571 = vmatprep.subr.bf16.mxu0 0
    %572 = vmatpush1.bf16.xpose.msra.mxu0 0
    %573 = vmatprep.subr.bf16.mxu0 0
    %574 = vmatpush1.bf16.xpose.msra.mxu0 0
    %575 = vmatprep.subr.bf16.mxu0 0
    %576 = vmatpush1.bf16.xpose.msra.mxu0 0
    %577 = vmatprep.subr.bf16.mxu0 0
    %578 = vmatpush1.bf16.xpose.msra.mxu0 0
    %579 = vmatprep.mubr.bf16.mxu0 0
    %580 = vmatmul.mubr.bf16.gmra.mrb[0].mxu0 %v541
    %v581 = vpop.f32.mrb[0].mxu0
    %v582 = vadd.f32 0.0, %v581
    %v583 = vpop.f32.mrb[0].mxu0
    %v584 = vpop.f32.mrb[0].mxu0
    %v585 = vpop.f32.mrb[0].mxu0
    %586 = vdwg.mxu0
    %587 = vmatprep.subr.bf16.mxu0 0
    %588 = vmatpush1.bf16.xpose.msra.mxu0 %v544
    %589 = vmatprep.subr.bf16.mxu0 0
    %590 = vmatpush1.bf16.xpose.msra.mxu0 0
    %591 = vmatprep.subr.bf16.mxu0 0
    %592 = vmatpush1.bf16.xpose.msra.mxu0 0
    %593 = vmatprep.subr.bf16.mxu0 0
    %594 = vmatpush1.bf16.xpose.msra.mxu0 0
    %595 = vmatprep.subr.bf16.mxu0 0
    %596 = vmatpush1.bf16.xpose.msra.mxu0 0
    %597 = vmatprep.subr.bf16.mxu0 0
    %598 = vmatpush1.bf16.xpose.msra.mxu0 0
    %599 = vmatprep.subr.bf16.mxu0 0
    %600 = vmatpush1.bf16.xpose.msra.mxu0 0
    %601 = vmatprep.subr.bf16.mxu0 0
    %602 = vmatpush1.bf16.xpose.msra.mxu0 0
    %603 = vmatprep.subr.bf16.mxu0 0
    %604 = vmatpush1.bf16.xpose.msra.mxu0 0
    %605 = vmatprep.subr.bf16.mxu0 0
    %606 = vmatpush1.bf16.xpose.msra.mxu0 0
    %607 = vmatprep.subr.bf16.mxu0 0
    %608 = vmatpush1.bf16.xpose.msra.mxu0 0
    %609 = vmatprep.subr.bf16.mxu0 0
    %610 = vmatpush1.bf16.xpose.msra.mxu0 0
    %611 = vmatprep.subr.bf16.mxu0 0
    %612 = vmatpush1.bf16.xpose.msra.mxu0 0
    %613 = vmatprep.subr.bf16.mxu0 0
    %614 = vmatpush1.bf16.xpose.msra.mxu0 0
    %615 = vmatprep.subr.bf16.mxu0 0
    %616 = vmatpush1.bf16.xpose.msra.mxu0 0
    %617 = vmatprep.subr.bf16.mxu0 0
    %618 = vmatpush1.bf16.xpose.msra.mxu0 0
    %619 = vmatprep.mubr.bf16.mxu0 0
    %620 = vmatmul.mubr.bf16.gmra.mrb[0].mxu0 %v542
    %v621 = vpop.f32.mrb[0].mxu0
    %v622 = vadd.f32 0.0, %v621
    %v623 = vpop.f32.mrb[0].mxu0
    %v624 = vpop.f32.mrb[0].mxu0
    %v625 = vpop.f32.mrb[0].mxu0
    %626 = vdwg.mxu0
    %vm627 = vcmask 64512
    %v628 = vsel %vm627, %v582, -inf
    %629 = vmax.xlane.f32.xlu0 %v628
    %v630 = vpop.xlane.xlu0 %629
    %v631 = vsel %vm627, %v622, -inf
    %632 = vmax.xlane.f32.xlu0 %v631
    %v633 = vpop.xlane.xlu0 %632
    %v634 = vsub.f32 %v582, %v630
    %v635 = vsub.f32 %v622, %v633
    %v636 = vmul.f32 %v634, 1.442695
    %v637 = vpow.pop %v636
    %v638 = vmul.f32 %v635, 1.442695
    %v639 = vpow.pop %v638
    %v640 = vsel %vm627, %v637, 0.0
    %641 = vadd.xlane.f32.xlu0 %v640
    %v642 = vpop.xlane.xlu0 %641
    %v643 = vsel %vm627, %v639, 0.0
    %644 = vadd.xlane.f32.xlu0 %v643
    %v645 = vpop.xlane.xlu0 %644
    %v646 = vrcp.pop %v642
    %v647 = vrcp.pop %v645
    %v648 = vmul.f32 %v637, %v646
    %v649 = vmul.f32 %v639, %v647
    %v650 = vpack.c.bf16 %v648, %v648
    %v651 = vpack.c.bf16 %v649, %v649
    %v653 = vsel %vm627, %v650, 0
    %vm655 = vcmask 1043456
    %v657 = vsel %vm655, %v545, 0
    %659 = vmatprep.subr.bf16.mxu0 0
    %660 = vmatpush1.bf16.msra.mxu0 %v657
    %661 = vmatprep.subr.bf16.mxu0 0
    %662 = vmatpush1.bf16.msra.mxu0 0
    %663 = vmatprep.subr.bf16.mxu0 0
    %664 = vmatpush1.bf16.msra.mxu0 0
    %665 = vmatprep.subr.bf16.mxu0 0
    %666 = vmatpush1.bf16.msra.mxu0 0
    %667 = vmatprep.subr.bf16.mxu0 0
    %668 = vmatpush1.bf16.msra.mxu0 0
    %669 = vmatprep.subr.bf16.mxu0 0
    %670 = vmatpush1.bf16.msra.mxu0 0
    %671 = vmatprep.subr.bf16.mxu0 0
    %672 = vmatpush1.bf16.msra.mxu0 0
    %673 = vmatprep.subr.bf16.mxu0 0
    %674 = vmatpush1.bf16.msra.mxu0 0
    %675 = vmatprep.subr.bf16.mxu0 0
    %676 = vmatpush1.bf16.msra.mxu0 0
    %677 = vmatprep.subr.bf16.mxu0 0
    %678 = vmatpush1.bf16.msra.mxu0 0
    %679 = vmatprep.subr.bf16.mxu0 0
    %680 = vmatpush1.bf16.msra.mxu0 0
    %681 = vmatprep.subr.bf16.mxu0 0
    %682 = vmatpush1.bf16.msra.mxu0 0
    %683 = vmatprep.subr.bf16.mxu0 0
    %684 = vmatpush1.bf16.msra.mxu0 0
    %685 = vmatprep.subr.bf16.mxu0 0
    %686 = vmatpush1.bf16.msra.mxu0 0
    %687 = vmatprep.subr.bf16.mxu0 0
    %688 = vmatpush1.bf16.msra.mxu0 0
    %689 = vmatprep.subr.bf16.mxu0 0
    %690 = vmatpush1.bf16.msra.mxu0 0
    %691 = vmatprep.mubr.bf16.mxu0 0
    %692 = vmatmul.mubr.bf16.gmra.mrb[0].mxu0 %v653
    %v693 = vpop.f32.mrb[0].mxu0
    %v694 = vadd.f32 0.0, %v693
    %v695 = vpop.f32.mrb[0].mxu0
    %v696 = vpop.f32.mrb[0].mxu0
    %v697 = vpop.f32.mrb[0].mxu0
    %698 = vdwg.mxu0
    %v700 = vsel %vm627, %v651, 0
    %v703 = vsel %vm655, %v546, 0
    %705 = vmatprep.subr.bf16.mxu0 0
    %706 = vmatpush1.bf16.msra.mxu0 %v703
    %707 = vmatprep.subr.bf16.mxu0 0
    %708 = vmatpush1.bf16.msra.mxu0 0
    %709 = vmatprep.subr.bf16.mxu0 0
    %710 = vmatpush1.bf16.msra.mxu0 0
    %711 = vmatprep.subr.bf16.mxu0 0
    %712 = vmatpush1.bf16.msra.mxu0 0
    %713 = vmatprep.subr.bf16.mxu0 0
    %714 = vmatpush1.bf16.msra.mxu0 0
    %715 = vmatprep.subr.bf16.mxu0 0
    %716 = vmatpush1.bf16.msra.mxu0 0
    %717 = vmatprep.subr.bf16.mxu0 0
    %718 = vmatpush1.bf16.msra.mxu0 0
    %719 = vmatprep.subr.bf16.mxu0 0
    %720 = vmatpush1.bf16.msra.mxu0 0
    %721 = vmatprep.subr.bf16.mxu0 0
    %722 = vmatpush1.bf16.msra.mxu0 0
    %723 = vmatprep.subr.bf16.mxu0 0
    %724 = vmatpush1.bf16.msra.mxu0 0
    %725 = vmatprep.subr.bf16.mxu0 0
    %726 = vmatpush1.bf16.msra.mxu0 0
    %727 = vmatprep.subr.bf16.mxu0 0
    %728 = vmatpush1.bf16.msra.mxu0 0
    %729 = vmatprep.subr.bf16.mxu0 0
    %730 = vmatpush1.bf16.msra.mxu0 0
    %731 = vmatprep.subr.bf16.mxu0 0
    %732 = vmatpush1.bf16.msra.mxu0 0
    %733 = vmatprep.subr.bf16.mxu0 0
    %734 = vmatpush1.bf16.msra.mxu0 0
    %735 = vmatprep.subr.bf16.mxu0 0
    %736 = vmatpush1.bf16.msra.mxu0 0
    %737 = vmatprep.mubr.bf16.mxu0 0
    %738 = vmatmul.mubr.bf16.gmra.mrb[0].mxu0 %v700
    %v739 = vpop.f32.mrb[0].mxu0
    %v740 = vadd.f32 0.0, %v739
    %v741 = vpop.f32.mrb[0].mxu0
    %v742 = vpop.f32.mrb[0].mxu0
    %v743 = vpop.f32.mrb[0].mxu0
    %744 = vdwg.mxu0
    %v745 = vpack.c.bf16 %v740, %v694
    %v746 = vld [vmem:[#allocation17] sm:$0xf]
    %v747 = vld [vmem:[#allocation17 + $0x4] sm:$0xf]
    %v748 = vld [vmem:[#allocation17 + $0x8] sm:$0xf]
    %v749 = vld [vmem:[#allocation17 + $0xc] sm:$0xf]
    %v750 = vld [vmem:[#allocation17 + $0x10] sm:$0xf]
    %v751 = vld [vmem:[#allocation17 + $0x14] sm:$0xf]
    %v752 = vld [vmem:[#allocation17 + $0x18] sm:$0xf]
    %v753 = vld [vmem:[#allocation17 + $0x1c] sm:$0xf]
    %v754 = vld [vmem:[#allocation17 + $0x20] sm:$0xf]
    %v755 = vld [vmem:[#allocation17 + $0x24] sm:$0xf]
    %v756 = vld [vmem:[#allocation17 + $0x28] sm:$0xf]
    %v757 = vld [vmem:[#allocation17 + $0x2c] sm:$0xf]
    %v758 = vld [vmem:[#allocation17 + $0x30] sm:$0xf]
    %v759 = vld [vmem:[#allocation17 + $0x34] sm:$0xf]
    %v760 = vld [vmem:[#allocation17 + $0x38] sm:$0xf]
    %v761 = vld [vmem:[#allocation17 + $0x3c] sm:$0xf]
    %v762 = vld [vmem:[#allocation19] sm:$0x1]
    %v764 = vlaneseq
    %v765 = vshrl.u32 %v764, 7
    %v766 = vsub.s32 0, %v765
    %v767 = vrot.slane %v762, %v766
    %v785 = vunpack.c.l.b16 %v746
    %v786 = vunpack.c.l.b16 %v747
    %v787 = vunpack.c.l.b16 %v748
    %v788 = vunpack.c.l.b16 %v749
    %v789 = vunpack.c.l.b16 %v750
    %v790 = vunpack.c.l.b16 %v751
    %v791 = vunpack.c.l.b16 %v752
    %v792 = vunpack.c.l.b16 %v753
    %v793 = vunpack.c.l.b16 %v754
    %v794 = vunpack.c.l.b16 %v755
    %v795 = vunpack.c.l.b16 %v756
    %v796 = vunpack.c.l.b16 %v757
    %v797 = vunpack.c.l.b16 %v758
    %v798 = vunpack.c.l.b16 %v759
    %v799 = vunpack.c.l.b16 %v760
    %v800 = vunpack.c.l.b16 %v761
    %v801 = vpack.c.b16 %v786, %v785
    %v802 = vpack.c.b16 %v788, %v787
    %v803 = vpack.c.b16 %v790, %v789
    %v804 = vpack.c.b16 %v792, %v791
    %v805 = vpack.c.b16 %v794, %v793
    %v806 = vpack.c.b16 %v796, %v795
    %v807 = vpack.c.b16 %v798, %v797
    %v808 = vpack.c.b16 %v800, %v799
    %817 = vmatprep.subr.bf16.mxu0 0
    %818 = vmatpush1.bf16.msra.mxu0 %v801
    %819 = vmatprep.subr.bf16.mxu0 0
    %820 = vmatpush1.bf16.msra.mxu0 %v802
    %821 = vmatprep.subr.bf16.mxu0 0
    %822 = vmatpush1.bf16.msra.mxu0 %v803
    %823 = vmatprep.subr.bf16.mxu0 0
    %824 = vmatpush1.bf16.msra.mxu0 %v804
    %825 = vmatprep.subr.bf16.mxu0 0
    %826 = vmatpush1.bf16.msra.mxu0 %v805
    %827 = vmatprep.subr.bf16.mxu0 0
    %828 = vmatpush1.bf16.msra.mxu0 %v806
    %829 = vmatprep.subr.bf16.mxu0 0
    %830 = vmatpush1.bf16.msra.mxu0 %v807
    %831 = vmatprep.subr.bf16.mxu0 0
    %832 = vmatpush1.bf16.msra.mxu0 %v808
    %833 = vmatprep.subr.bf16.mxu0 0
    %834 = vmatpush1.bf16.msra.mxu0 0
    %835 = vmatprep.subr.bf16.mxu0 0
    %836 = vmatpush1.bf16.msra.mxu0 0
    %837 = vmatprep.subr.bf16.mxu0 0
    %838 = vmatpush1.bf16.msra.mxu0 0
    %839 = vmatprep.subr.bf16.mxu0 0
    %840 = vmatpush1.bf16.msra.mxu0 0
    %841 = vmatprep.subr.bf16.mxu0 0
    %842 = vmatpush1.bf16.msra.mxu0 0
    %843 = vmatprep.subr.bf16.mxu0 0
    %844 = vmatpush1.bf16.msra.mxu0 0
    %845 = vmatprep.subr.bf16.mxu0 0
    %846 = vmatpush1.bf16.msra.mxu0 0
    %847 = vmatprep.subr.bf16.mxu0 0
    %848 = vmatpush1.bf16.msra.mxu0 0
    %849 = vmatprep.mubr.bf16.mxu0 0
    %850 = vmatmul.mubr.bf16.gmra.mrb[0].mxu0 %v745
    %v851 = vpop.f32.mrb[0].mxu0
    %v852 = vadd.f32 %v767, %v851
    %v853 = vpop.f32.mrb[0].mxu0
    %v854 = vpop.f32.mrb[0].mxu0
    %v855 = vadd.f32 %v767, %v854
    %v856 = vpop.f32.mrb[0].mxu0
    %857 = vdwg.mxu0
    %858 = vst [vmem:[#allocation20] sm:$0xff] %v852
    %859 = vst [vmem:[#allocation20 + $0x8] sm:$0xff] %v855
    // Predicated region
    $region90: #{tpu_custom_call.1} parent=1 // pred_check
      _
    $region91: #{tpu_custom_call.1} parent=1 // pred_check_branch
      %861 = sbr.rel (0) target = $region93
    $region92: #{tpu_custom_call.1} parent=1 // pred_region
      %s863 = ssub.s32 256, 256
      %864 = vsyncadd [#allocation4], %s863
      %s865 = sshll.u32 [#allocation20], 4
      %s866 = int_to_ptr.vmem [resolvable:$true] %s865
      %871 = dma.vmem_to_hbm [thread:$0]  %s866, 256, %s11, [#allocation4], 128, 128, 8
    $region93: #{tpu_custom_call.1} parent=1 // pred_fallthru
      _
    // Predicated region
    $region94: #{tpu_custom_call.1} parent=1 // pred_check
      _
    $region95: #{tpu_custom_call.1} parent=1 // pred_check_branch
      %873 = sbr.rel (0) target = $region97
    $region96: #{tpu_custom_call.1} parent=1 // pred_region
      %874 = dma.done [#allocation4], 256
    $region97: #{tpu_custom_call.1} parent=1 // pred_fallthru
      _
    %875 = vsyncpa [#allocation3], 1
    %876 = vsyncpa [#allocation6], 1
    %877 = vsyncpa [#allocation9], 1
    %878 = vsyncpa [#allocation12], 1
    %879 = vsyncpa [#allocation15], 1
    %880 = vsyncpa [#allocation18], 1
    %881 = vsyncpa [#allocation4], 1

</llo_original>
